<compile_context>
chip_gen: v7x
topology: tpu7x:2x2x1
jax: 0.10.0
libtpu: 0.0.40
codegen_flags: <defaults>
</compile_context>

<pallas_src>
import math

import jax
import jax.numpy as jnp
from jax.experimental import pallas as pl
from jax.experimental.pallas import tpu as pltpu


def cosine_beta_schedule(timesteps, s=0.008):
    steps = timesteps + 1
    t = jnp.linspace(0.0, float(timesteps), steps, dtype=jnp.float32) / float(timesteps)
    alphas_cumprod = jnp.cos((t + s) / (1.0 + s) * math.pi * 0.5) ** 2
    alphas_cumprod = alphas_cumprod / alphas_cumprod[0]
    betas = 1.0 - (alphas_cumprod[1:] / alphas_cumprod[:-1])
    return jnp.clip(betas, 0.0, 0.999)


def _pick_hw_tile(hw, cap=2048):
    """Largest multiple-of-128 divisor of hw that is <= cap (else full extent)."""
    if hw % 128 != 0:
        return hw            # full-extent lane block is always legal
    t = min(cap, hw)
    t -= t % 128
    while hw % t != 0:
        t -= 128
    return t


def medsegdiff_forward(img, cond_img, times, noise, params, buffers):
    """img: (B, Cm, H, W) NCHW in [0,1]; cond_img: (B, Cc, H, W); times: (B,) int32."""
    B, Cm, H, W = img.shape
    _, Cc, _, _ = cond_img.shape
    HW = H * W
    Td, hidden = params["wt"].shape

    # NCHW -> (B, C, H*W): pure reshape, spatial lands on the lane axis.
    img_f = img.reshape(B, Cm, HW).astype(jnp.float32)
    cond_f = cond_img.reshape(B, Cc, HW).astype(jnp.float32)
    noise_f = noise.reshape(B, Cm, HW).astype(jnp.float32)

    # per-batch scalar coefficients gathered from the diffusion buffers
    coefs = jnp.stack(
        [buffers["sqrt_alphas_cumprod"][times],
         buffers["sqrt_one_minus_alphas_cumprod"][times],
         buffers["loss_weight"][times]],
        axis=-1,
    ).astype(jnp.float32)                                                    # (B, 3)

    # sinusoidal time embedding + its projection: hoisted out of the kernel (glue)
    half = Td // 2
    freqs = jnp.exp(-math.log(10000.0) * jnp.arange(half, dtype=jnp.float32) / (half - 1))
    args = times.astype(jnp.float32)[:, None] * freqs[None, :]
    temb = jnp.concatenate([jnp.sin(args), jnp.cos(args)], axis=-1)          # (B, Td)
    th = (temb @ params["wt"] + params["b1"]).astype(jnp.float32)            # (B, hidden)
    th_col = th[:, :, None]                                                  # (B, hidden, 1)

    # transposed weights for the channels-first layout
    w1a_t = jnp.transpose(params["w1a"]).astype(jnp.float32)                 # (hidden, Cm)
    w1b_t = jnp.transpose(params["w1b"]).astype(jnp.float32)                 # (hidden, Cc)
    w2_t = jnp.transpose(params["w2"]).astype(jnp.bfloat16)                  # (Cm, hidden) bf16 MXU operand
    b2_col = jnp.transpose(params["b2"]).astype(jnp.float32)                 # (Cm, 1)

    THW = _pick_hw_tile(HW)
    n_hw = HW // THW
    inv_count = 1.0 / float(Cm * HW)      # mean over 'b ... -> b'

    def kernel(coefs_ref, img_ref, cond_ref, noise_ref, th_ref,
               w1a_ref, w1b_ref, w2_ref, b2_ref, loss_ref, sse_ref):
        b = pl.program_id(0)
        t_hw = pl.program_id(1)

        sa = coefs_ref[b, 0]      # sqrt_alphas_cumprod[t_b]
        soma = coefs_ref[b, 1]    # sqrt_one_minus_alphas_cumprod[t_b]
        lw = coefs_ref[b, 2]      # loss_weight[t_b]

        @pl.when(t_hw == 0)
        def _():
            sse_ref[0] = jnp.float32(0.0)

        # normalize_to_neg_one_to_one + q_sample   (all (C, THW), lane-dense)
        x0 = img_ref[0] * 2.0 - 1.0
        noise_t = noise_ref[0]
        x_t = sa * x0 + soma * noise_t
        cond = cond_ref[0]

        # model layer 1: 1x1 conv over [x_t | cond] + time bias.  K = Cm + Cc is
        # tiny -> VPU outer products instead of degenerate K=1/K=3 MXU passes.
        h = th_ref[0] + w1a_ref[:, 0:1] * x_t[0:1, :]                        # (hidden, THW)
        for c in range(1, Cm):
            h = h + w1a_ref[:, c:c + 1] * x_t[c:c + 1, :]
        for c in range(Cc):
            h = h + w1b_ref[:, c:c + 1] * cond[c:c + 1, :]
        h = jnp.maximum(h, 0.0)

        # model layer 2: K = hidden contraction on the MXU (bf16 operands, f32 acc)
        out = jnp.dot(w2_ref[...], h.astype(jnp.bfloat16),
                      preferred_element_type=jnp.float32) + b2_ref[...]      # (Cm, THW)

        # objective == 'pred_noise' -> target = noise; accumulate SSE over HW tiles
        err = out - noise_t
        sse_ref[0] += jnp.sum(err * err)

        # running value; the last HW tile leaves the final loss in the resident block
        loss_ref[...] = jnp.full((1, 1, 128), sse_ref[0] * inv_count * lw,
                                 dtype=loss_ref.dtype)

    loss_padded = pl.pallas_call(
        kernel,
        out_shape=jax.ShapeDtypeStruct((B, 1, 128), jnp.float32),
        grid=(B, n_hw),
        in_specs=[
            pl.BlockSpec(memory_space=pltpu.MemorySpace.SMEM),               # coefs (B,3)
            pl.BlockSpec((1, Cm, THW), lambda b, t: (b, 0, t)),              # img
            pl.BlockSpec((1, Cc, THW), lambda b, t: (b, 0, t)),              # cond
            pl.BlockSpec((1, Cm, THW), lambda b, t: (b, 0, t)),              # noise
            pl.BlockSpec((1, hidden, 1), lambda b, t: (b, 0, 0)),            # per-batch time bias
            pl.BlockSpec((hidden, Cm), lambda b, t: (0, 0)),                 # w1a^T
            pl.BlockSpec((hidden, Cc), lambda b, t: (0, 0)),                 # w1b^T
            pl.BlockSpec((Cm, hidden), lambda b, t: (0, 0)),                 # w2^T (bf16)
            pl.BlockSpec((Cm, 1), lambda b, t: (0, 0)),                      # b2^T
        ],
        # per-batch lane-dense output block -> batch axis megacore-shardable on v7x
        out_specs=pl.BlockSpec((1, 1, 128), lambda b, t: (b, 0, 0)),
        scratch_shapes=[pltpu.SMEM((1,), jnp.float32)],                      # SSE accumulator
        compiler_params=pltpu.CompilerParams(
            dimension_semantics=("parallel", "arbitrary")),
    )(coefs, img_f, cond_f, noise_f, th_col, w1a_t, w1b_t, w2_t, b2_col)

    loss = loss_padded[:, 0, 0]     # (B,)  == p_losses loss
    return loss, times              # forward returns (loss, t)


if __name__ == "__main__":
    key = jax.random.PRNGKey(0)
    B, Cm, Cc, H, W = 2, 1, 3, 16, 16     # batch, mask_channels, input_img_channels, image_size
    hidden, Td = 32, 32
    timesteps = 100

    k_img, k_cond, k_noise, k_t, k1, k2, k3, k4 = jax.random.split(key, 8)
    img = jax.random.uniform(k_img, (B, Cm, H, W), dtype=jnp.float32)      # segmentation mask in [0,1]
    cond_img = jax.random.normal(k_cond, (B, Cc, H, W), dtype=jnp.float32)
    class_label = jnp.zeros((B,), dtype=jnp.int32)  # TODO(synk): class conditioning / self-conditioning
    # live inside the user-supplied `model`; the synthetic stand-in model here ignores them
    # (self_condition=False so the random self-cond branch is statically skipped).
    noise = jax.random.normal(k_noise, (B, Cm, H, W), dtype=jnp.float32)
    # get_time(): sample without replacement from the timepool -> deterministic permutation here
    times = jax.random.permutation(k_t, timesteps)[:B].astype(jnp.int32)

    # diffusion buffers (beta_schedule='cosine', objective='pred_noise', min_snr_loss_weight=False)
    betas = cosine_beta_schedule(timesteps)
    alphas = 1.0 - betas
    alphas_cumprod = jnp.cumprod(alphas)
    snr = alphas_cumprod / (1.0 - alphas_cumprod)
    buffers = dict(
        sqrt_alphas_cumprod=jnp.sqrt(alphas_cumprod),
        sqrt_one_minus_alphas_cumprod=jnp.sqrt(1.0 - alphas_cumprod),
        loss_weight=snr / snr,   # pred_noise, no min-snr clipping -> ones
    )

    # deterministic synthetic "model" parameters (tiny 1x1-conv UNet stand-in)
    def init(k, shape, scale):
        return (scale * jax.random.normal(k, shape)).astype(jnp.float32)

    params = dict(
        w1a=init(k1, (Cm, hidden), 0.5),
        w1b=init(k2, (Cc, hidden), 0.3),
        wt=init(k3, (Td, hidden), 0.1),
        b1=jnp.zeros((1, hidden), jnp.float32),
        w2=init(k4, (hidden, Cm), 0.2),
        b2=jnp.zeros((1, Cm), jnp.float32),
    )

    loss, t_out = medsegdiff_forward(img, cond_img, times, noise, params, buffers)
    jax.block_until_ready(loss)
    assert loss.shape == (B,) and t_out.shape == (B,)
    print("KERNEL_OK")
</pallas_src>

<mosaic_0001>
module attributes {stable_mosaic.version = 11 : i64} {
  func.func @kernel(%arg0: i32, %arg1: i32, %arg2: memref<2x3xf32, #tpu.memory_space<smem>>, %arg3: memref<1x1x256xf32, #tpu.memory_space<vmem>>, %arg4: memref<1x3x256xf32, #tpu.memory_space<vmem>>, %arg5: memref<1x1x256xf32, #tpu.memory_space<vmem>>, %arg6: memref<1x32x1xf32, #tpu.memory_space<vmem>>, %arg7: memref<32x1xf32, #tpu.memory_space<vmem>>, %arg8: memref<32x3xf32, #tpu.memory_space<vmem>>, %arg9: memref<1x32xbf16, #tpu.memory_space<vmem>>, %arg10: memref<1x1xf32, #tpu.memory_space<vmem>>, %arg11: memref<1x1x128xf32, #tpu.memory_space<vmem>>, %arg12: memref<1xf32, #tpu.memory_space<smem>>) attributes {dimension_semantics = [#tpu.dimension_semantics<parallel>, #tpu.dimension_semantics<arbitrary>], iteration_bounds = array<i64: 2, 1>, scalar_prefetch = 0 : i64, scratch_operands = 1 : i64, tpu.core_type = #tpu.core_type<tc>, window_params = [{transform_indices = @transform_0, window_bounds = array<i64: 2, 3>}, {transform_indices = @transform_1, window_bounds = array<i64: 1, 1, 256>}, {transform_indices = @transform_2, window_bounds = array<i64: 1, 3, 256>}, {transform_indices = @transform_3, window_bounds = array<i64: 1, 1, 256>}, {transform_indices = @transform_4, window_bounds = array<i64: 1, 32, 1>}, {pipeline_mode = #tpu.pipeline_mode<synchronous>, transform_indices = @transform_5, window_bounds = array<i64: 32, 1>}, {pipeline_mode = #tpu.pipeline_mode<synchronous>, transform_indices = @transform_6, window_bounds = array<i64: 32, 3>}, {pipeline_mode = #tpu.pipeline_mode<synchronous>, transform_indices = @transform_7, window_bounds = array<i64: 1, 32>}, {pipeline_mode = #tpu.pipeline_mode<synchronous>, transform_indices = @transform_8, window_bounds = array<i64: 1, 1>}, {transform_indices = @transform_9, window_bounds = array<i64: 1, 1, 128>}]} {
    %0 = arith.index_cast %arg0 : i32 to index
    %c0 = arith.constant 0 : index
    %1 = memref.load %arg2[%0, %c0] : memref<2x3xf32, #tpu.memory_space<smem>>
    %2 = arith.index_cast %arg0 : i32 to index
    %c1 = arith.constant 1 : index
    %3 = memref.load %arg2[%2, %c1] : memref<2x3xf32, #tpu.memory_space<smem>>
    %4 = arith.index_cast %arg0 : i32 to index
    %c2 = arith.constant 2 : index
    %5 = memref.load %arg2[%4, %c2] : memref<2x3xf32, #tpu.memory_space<smem>>
    %c0_i32 = arith.constant 0 : i32
    %6 = arith.cmpi eq, %arg1, %c0_i32 : i32
    %7 = arith.extui %6 : i1 to i32
    %c0_i32_0 = arith.constant 0 : i32
    %8 = arith.cmpi ne, %7, %c0_i32_0 : i32
    scf.if %8 {
      %cst_36 = arith.constant 0.000000e+00 : f32
      %c0_37 = arith.constant 0 : index
      %72 = memref.load %arg12[%c0_37] : memref<1xf32, #tpu.memory_space<smem>>
      memref.store %cst_36, %arg12[%c0_37] : memref<1xf32, #tpu.memory_space<smem>>
    } else {
    }
    %c0_1 = arith.constant 0 : index
    %c0_2 = arith.constant 0 : index
    %c0_3 = arith.constant 0 : index
    %9 = vector.load %arg3[%c0_1, %c0_2, %c0_3] : memref<1x1x256xf32, #tpu.memory_space<vmem>>, vector<1x1x256xf32>
    %10 = vector.shape_cast %9 : vector<1x1x256xf32> to vector<1x256xf32>
    %cst = arith.constant 2.000000e+00 : f32
    %11 = vector.broadcast %cst : f32 to vector<1x256xf32>
    %12 = arith.mulf %10, %11 : vector<1x256xf32>
    %cst_4 = arith.constant 1.000000e+00 : f32
    %13 = vector.broadcast %cst_4 : f32 to vector<1x256xf32>
    %14 = arith.subf %12, %13 : vector<1x256xf32>
    %c0_5 = arith.constant 0 : index
    %c0_6 = arith.constant 0 : index
    %c0_7 = arith.constant 0 : index
    %15 = vector.load %arg5[%c0_5, %c0_6, %c0_7] : memref<1x1x256xf32, #tpu.memory_space<vmem>>, vector<1x1x256xf32>
    %16 = vector.shape_cast %15 : vector<1x1x256xf32> to vector<1x256xf32>
    %17 = vector.broadcast %1 : f32 to vector<1x256xf32>
    %18 = arith.mulf %17, %14 : vector<1x256xf32>
    %19 = vector.broadcast %3 : f32 to vector<1x256xf32>
    %20 = arith.mulf %19, %16 : vector<1x256xf32>
    %21 = arith.addf %18, %20 : vector<1x256xf32>
    %c0_8 = arith.constant 0 : index
    %c0_9 = arith.constant 0 : index
    %c0_10 = arith.constant 0 : index
    %22 = vector.load %arg4[%c0_8, %c0_9, %c0_10] : memref<1x3x256xf32, #tpu.memory_space<vmem>>, vector<1x3x256xf32>
    %23 = vector.shape_cast %22 : vector<1x3x256xf32> to vector<3x256xf32>
    %c0_11 = arith.constant 0 : index
    %c0_12 = arith.constant 0 : index
    %c0_13 = arith.constant 0 : index
    %24 = vector.load %arg6[%c0_11, %c0_12, %c0_13] : memref<1x32x1xf32, #tpu.memory_space<vmem>>, vector<1x32x1xf32>
    %25 = vector.shape_cast %24 : vector<1x32x1xf32> to vector<32x1xf32>
    %c0_14 = arith.constant 0 : index
    %c0_15 = arith.constant 0 : index
    %26 = vector.load %arg7[%c0_14, %c0_15] : memref<32x1xf32, #tpu.memory_space<vmem>>, vector<32x1xf32>
    %27 = vector.broadcast %26 : vector<32x1xf32> to vector<32x256xf32>
    %28 = vector.broadcast %21 : vector<1x256xf32> to vector<32x256xf32>
    %29 = arith.mulf %27, %28 : vector<32x256xf32>
    %30 = vector.broadcast %25 : vector<32x1xf32> to vector<32x256xf32>
    %31 = arith.addf %30, %29 : vector<32x256xf32>
    %c0_16 = arith.constant 0 : index
    %c0_17 = arith.constant 0 : index
    %32 = vector.load %arg8[%c0_16, %c0_17] : memref<32x3xf32, #tpu.memory_space<vmem>>, vector<32x1xf32>
    %33 = vector.extract_strided_slice %23 {offsets = [0, 0], sizes = [1, 256], strides = [1, 1]} : vector<3x256xf32> to vector<1x256xf32>
    %34 = vector.broadcast %32 : vector<32x1xf32> to vector<32x256xf32>
    %35 = vector.broadcast %33 : vector<1x256xf32> to vector<32x256xf32>
    %36 = arith.mulf %34, %35 : vector<32x256xf32>
    %37 = arith.addf %31, %36 : vector<32x256xf32>
    %c0_18 = arith.constant 0 : index
    %c1_19 = arith.constant 1 : index
    %38 = vector.load %arg8[%c0_18, %c1_19] : memref<32x3xf32, #tpu.memory_space<vmem>>, vector<32x1xf32>
    %39 = vector.extract_strided_slice %23 {offsets = [1, 0], sizes = [1, 256], strides = [1, 1]} : vector<3x256xf32> to vector<1x256xf32>
    %40 = vector.broadcast %38 : vector<32x1xf32> to vector<32x256xf32>
    %41 = vector.broadcast %39 : vector<1x256xf32> to vector<32x256xf32>
    %42 = arith.mulf %40, %41 : vector<32x256xf32>
    %43 = arith.addf %37, %42 : vector<32x256xf32>
    %c0_20 = arith.constant 0 : index
    %c2_21 = arith.constant 2 : index
    %44 = vector.load %arg8[%c0_20, %c2_21] : memref<32x3xf32, #tpu.memory_space<vmem>>, vector<32x1xf32>
    %45 = vector.extract_strided_slice %23 {offsets = [2, 0], sizes = [1, 256], strides = [1, 1]} : vector<3x256xf32> to vector<1x256xf32>
    %46 = vector.broadcast %44 : vector<32x1xf32> to vector<32x256xf32>
    %47 = vector.broadcast %45 : vector<1x256xf32> to vector<32x256xf32>
    %48 = arith.mulf %46, %47 : vector<32x256xf32>
    %49 = arith.addf %43, %48 : vector<32x256xf32>
    %cst_22 = arith.constant 0.000000e+00 : f32
    %50 = vector.broadcast %cst_22 : f32 to vector<32x256xf32>
    %51 = arith.maximumf %49, %50 : vector<32x256xf32>
    %c0_23 = arith.constant 0 : index
    %c0_24 = arith.constant 0 : index
    %52 = vector.load %arg9[%c0_23, %c0_24] : memref<1x32xbf16, #tpu.memory_space<vmem>>, vector<1x32xbf16>
    %53 = arith.truncf %51 : vector<32x256xf32> to vector<32x256xbf16>
    %cst_25 = arith.constant dense<0.000000e+00> : vector<1x256xf32>
    %54 = tpu.matmul %52, %53, %cst_25 {dimension_numbers = #tpu.dot_dimension_numbers<[1], [0], [0], [1], [0, 0, 1, 1], [], []>} : vector<1x32xbf16>, vector<32x256xbf16>, vector<1x256xf32> -> vector<1x256xf32>
    %c0_26 = arith.constant 0 : index
    %c0_27 = arith.constant 0 : index
    %55 = vector.load %arg10[%c0_26, %c0_27] : memref<1x1xf32, #tpu.memory_space<vmem>>, vector<1x1xf32>
    %56 = vector.broadcast %55 : vector<1x1xf32> to vector<1x256xf32>
    %57 = arith.addf %54, %56 : vector<1x256xf32>
    %58 = arith.subf %57, %16 : vector<1x256xf32>
    %c0_28 = arith.constant 0 : index
    %59 = memref.load %arg12[%c0_28] : memref<1xf32, #tpu.memory_space<smem>>
    %60 = arith.mulf %58, %58 : vector<1x256xf32>
    %61 = vector.shape_cast %60 : vector<1x256xf32> to vector<1x1x256xf32>
    %cst_29 = arith.constant dense<0.000000e+00> : vector<1xf32>
    %62 = vector.multi_reduction <add>, %61, %cst_29 [1, 2] : vector<1x1x256xf32> to vector<1xf32>
    %63 = vector.shape_cast %62 : vector<1xf32> to vector<1x1x1xf32>
    %64 = vector.extract %63[0, 0, 0] : f32 from vector<1x1x1xf32>
    %65 = arith.addf %59, %64 : f32
    %c0_30 = arith.constant 0 : index
    %66 = memref.load %arg12[%c0_30] : memref<1xf32, #tpu.memory_space<smem>>
    memref.store %65, %arg12[%c0_30] : memref<1xf32, #tpu.memory_space<smem>>
    %c0_31 = arith.constant 0 : index
    %67 = memref.load %arg12[%c0_31] : memref<1xf32, #tpu.memory_space<smem>>
    %cst_32 = arith.constant 3.906250e-03 : f32
    %68 = arith.mulf %67, %cst_32 : f32
    %69 = arith.mulf %68, %5 : f32
    %70 = vector.broadcast %69 : f32 to vector<1x1x128xf32>
    %c0_33 = arith.constant 0 : index
    %c0_34 = arith.constant 0 : index
    %c0_35 = arith.constant 0 : index
    %71 = vector.load %arg11[%c0_33, %c0_34, %c0_35] : memref<1x1x128xf32, #tpu.memory_space<vmem>>, vector<1x1x128xf32>
    tpu.vector_store %arg11[%c0_33, %c0_34, %c0_35], %70 {strides = array<i32>} : memref<1x1x128xf32, #tpu.memory_space<vmem>>, vector<1x1x128xf32>,
    return
  }
  func.func @transform_0(%arg0: i32, %arg1: i32) -> (i32, i32) {
    %c0_i32 = arith.constant 0 : i32
    %c0_i32_0 = arith.constant 0 : i32
    %c0_i32_1 = arith.constant 0 : i32
    return %c0_i32, %c0_i32_0 : i32, i32
  }
  func.func @transform_1(%arg0: i32, %arg1: i32) -> (i32, i32, i32) {
    %c0_i32 = arith.constant 0 : i32
    %c0_i32_0 = arith.constant 0 : i32
    return %arg0, %c0_i32, %arg1 : i32, i32, i32
  }
  func.func @transform_2(%arg0: i32, %arg1: i32) -> (i32, i32, i32) {
    %c0_i32 = arith.constant 0 : i32
    %c0_i32_0 = arith.constant 0 : i32
    return %arg0, %c0_i32, %arg1 : i32, i32, i32
  }
  func.func @transform_3(%arg0: i32, %arg1: i32) -> (i32, i32, i32) {
    %c0_i32 = arith.constant 0 : i32
    %c0_i32_0 = arith.constant 0 : i32
    return %arg0, %c0_i32, %arg1 : i32, i32, i32
  }
  func.func @transform_4(%arg0: i32, %arg1: i32) -> (i32, i32, i32) {
    %c0_i32 = arith.constant 0 : i32
    %c0_i32_0 = arith.constant 0 : i32
    %c0_i32_1 = arith.constant 0 : i32
    return %arg0, %c0_i32, %c0_i32_0 : i32, i32, i32
  }
  func.func @transform_5(%arg0: i32, %arg1: i32) -> (i32, i32) {
    %c0_i32 = arith.constant 0 : i32
    %c0_i32_0 = arith.constant 0 : i32
    %c0_i32_1 = arith.constant 0 : i32
    return %c0_i32, %c0_i32_0 : i32, i32
  }
  func.func @transform_6(%arg0: i32, %arg1: i32) -> (i32, i32) {
    %c0_i32 = arith.constant 0 : i32
    %c0_i32_0 = arith.constant 0 : i32
    %c0_i32_1 = arith.constant 0 : i32
    return %c0_i32, %c0_i32_0 : i32, i32
  }
  func.func @transform_7(%arg0: i32, %arg1: i32) -> (i32, i32) {
    %c0_i32 = arith.constant 0 : i32
    %c0_i32_0 = arith.constant 0 : i32
    %c0_i32_1 = arith.constant 0 : i32
    return %c0_i32, %c0_i32_0 : i32, i32
  }
  func.func @transform_8(%arg0: i32, %arg1: i32) -> (i32, i32) {
    %c0_i32 = arith.constant 0 : i32
    %c0_i32_0 = arith.constant 0 : i32
    %c0_i32_1 = arith.constant 0 : i32
    return %c0_i32, %c0_i32_0 : i32, i32
  }
  func.func @transform_9(%arg0: i32, %arg1: i32) -> (i32, i32, i32) {
    %c0_i32 = arith.constant 0 : i32
    %c0_i32_0 = arith.constant 0 : i32
    %c0_i32_1 = arith.constant 0 : i32
    return %arg0, %c0_i32, %c0_i32_0 : i32, i32, i32
  }
}

</mosaic_0001>

<llo_original>
// kernel: tpu_custom_call.1
$region0: #{tpu_custom_call.1}
  #allocation0 [shape = 'u32[]', space=smem, size = 0x4, offset = 0x4, fixed_abs, tag = 'smem constant byte address 0x4 - core index']
  #allocation1 [shape = 'u32[144,128]{1,0:T(1,128)}', space=vmem, size = 0x12000, scoped, tag = 'internal scratch']
  #allocation2 [shape = 'f32[1]{0:T(128)}', space=smem, size = 0x200, scoped, tag = 'scratch operand']
  #allocation3 [shape = 'f32[1,1]{1,0:T(1,128)S(1)}', space=vmem, size = 0x200, scoped, tag = 'scoped memory for tpu_custom_call.1']
  %s0 = inlined_call_operand.vmem [shape: f32[2,3], index: 0, kind: input, shape index: {}]
  %s1 = inlined_call_operand.vmem [shape: f32[2,1,256], index: 1, kind: input, shape index: {}]
  %s2 = inlined_call_operand.vmem [shape: f32[2,3,256], index: 2, kind: input, shape index: {}]
  %s3 = inlined_call_operand.vmem [shape: f32[2,1,256], index: 3, kind: input, shape index: {}]
  %s4 = inlined_call_operand.vmem [shape: f32[2,32,1], index: 4, kind: input, shape index: {}]
  %s5 = inlined_call_operand.vmem [shape: f32[32,1], index: 5, kind: input, shape index: {}]
  %s6 = inlined_call_operand.vmem [shape: f32[32,3], index: 6, kind: input, shape index: {}]
  %s7 = inlined_call_operand.vmem [shape: bf16[1,32], index: 7, kind: input, shape index: {}]
  %s8 = inlined_call_operand.<no memory space> [shape: f32[1,1], index: 8, kind: input, shape index: {}]
  %s9 = inlined_call_operand.hbm [shape: f32[2,1,128], index: 9, kind: output, shape index: {}]
  %s10 = sld [smem:[#allocation0]]
  $region77: #{tpu_custom_call.1} parent=0
    _
  %s12 = ssub.s32 1, %s10
  %s13 = scalar_select 0, %s12, %s10
  %v14 = vstv %s8
  %15 = vst [vmem:[#allocation3] sm:$0x1] %v14
  $region1: #{tpu_custom_call.1} parent=0
    #allocation4 [shape = 'u8[1024]{0}', space=smem, size = 0x400, scoped, tag = 'input window, operand 0, single buffered']
    #allocation5 [shape = 's32[2]{0}', space=sflag, size = 0x8, scoped, tag = 'scoped memory for tpu_custom_call.1']
    #allocation6 [shape = 's32[2]{0}', space=sflag, size = 0x8, scoped, tag = 'scoped memory for tpu_custom_call.1']
    #allocation7 [shape = 'u8[1024]{0}', space=vmem, size = 0x400, scoped, tag = 'output window, operand 0']
    %16 = vsyncpa [#allocation6], 0
    %17 = vsyncpa [#allocation5], 0
    %s18 = scalar_lea.sflag [#allocation5], 1
    %19 = vsyncpa %s18, 0
    loop: start=0, step=1, limit=4
    $region2: #{tpu_custom_call.1} parent=1 // loop_pre_header
      _
    $region3: #{tpu_custom_call.1} parent=1 // loop_header
      %s21 = sphi 0, %s25
      %p22 = scmp.ge.s32.totalorder %s21, 4
      %s28 = sphi 0, %s40
      %s29 = sphi 0, %s36
      %s30 = sphi 0, %s28
      %s31 = sphi 0, %s29
      %s32 = sphi 0, %s30
      %s33 = sphi 0, %s31
      %s41 = sphi 0, %s41
      %s43 = sphi 0, %s41
      %s44 = sphi 0, %s43
      %s58 = sphi 0, %s44
      %s66 = sphi 0, %s68
      %s69 = sphi 0, %s66
      %s70 = sphi 0, %s69
      %s86 = sphi 0, %s70
      %s94 = sphi 0, %s96
      %s97 = sphi 0, %s94
      %s98 = sphi 0, %s97
      %s114 = sphi 0, %s98
      %s122 = sphi 0, %s124
      %s125 = sphi 0, %s122
      %s126 = sphi 0, %s125
      %s142 = sphi 0, %s126
      %s148 = sphi 0, %s150
      %s151 = sphi 0, %s148
      %s152 = sphi 0, %s151
      %s168 = sphi 0, %s152
      %s172 = sphi 0, %s172
      %s174 = sphi 0, %s172
      %s175 = sphi 0, %s174
      %s189 = sphi 0, %s175
      %s193 = sphi 0, %s193
      %s195 = sphi 0, %s193
      %s196 = sphi 0, %s195
      %s210 = sphi 0, %s196
      %s214 = sphi 0, %s214
      %s216 = sphi 0, %s214
      %s217 = sphi 0, %s216
      %s231 = sphi 0, %s217
      %s235 = sphi 0, %s235
      %s237 = sphi 0, %s235
      %s238 = sphi 0, %s237
      %s252 = sphi 0, %s238
      %s258 = sphi 0, %s260
      %s261 = sphi 0, %s258
      %s262 = sphi 0, %s261
      %s278 = sphi 0, %s262
    $region4: #{tpu_custom_call.1} parent=1 // loop_header_branch
      %24 = sbr.rel (%p22) target = $region8
    $region5: #{tpu_custom_call.1} parent=1 // loop_body
      %s26 = ssub.s32 %s21, 1
      %s27 = ssub.s32 %s21, 2
      %s34 = sadd.s32 1, %s29
      %p35 = scmp.ge.s32.totalorder %s34, 1
      %s36 = scalar_select %p35, 0, %s34
      %s37 = sadd.s32 1, %s28
      %s38 = scalar_select %p35, %s37, %s28
      %p39 = scmp.ge.s32.totalorder %s38, 2
      %s40 = scalar_select %p39, 0, %s38
      %s42 = sadd.s32 %s41, 1
      %p45 = scmp.eq.s32.totalorder %s21, 1
      %p46 = scmp.ne.s32.totalorder %s41, %s43
      %p47 = scmp.eq.s32.totalorder %s21, 0
      %p48 = por %p46, %p47
      %p49 = scmp.ne.s32.totalorder %s41, %s43
      %p50 = scmp.eq.s32.totalorder %s26, 1
      %p51 = por %p49, %p50
      %p52 = scmp.ne.s32.totalorder %s43, %s44
      %p53 = scmp.eq.s32.totalorder %s26, 0
      %p54 = por %p52, %p53
      %p55 = scmp.ne.s32.totalorder %s43, %s44
      %p56 = scmp.eq.s32.totalorder %s27, 1
      %p57 = por %p55, %p56
      %p59 = scmp.ne.s32.totalorder %s44, %s58
      %p60 = scmp.eq.s32.totalorder %s27, 0
      %p61 = por %p59, %p60
      %s62 = ssub.s32 %s28, %s40
      %s63 = ssub.s32 %s29, %s36
      %s64 = sor.u32 %s62, %s63
      %p65 = scmp.eq.s32.totalorder %s64, 0
      %s67 = sadd.s32 %s66, 1
      %s68 = scalar_select %p65, %s66, %s67
      %p71 = pneg %p65
      %p72 = scmp.eq.s32.totalorder %s21, 1
      %p73 = por %p71, %p72
      %p74 = scmp.ne.s32.totalorder %s66, %s69
      %p75 = scmp.eq.s32.totalorder %s21, 0
      %p76 = por %p74, %p75
      %p77 = scmp.ne.s32.totalorder %s66, %s69
      %p78 = scmp.eq.s32.totalorder %s26, 1
      %p79 = por %p77, %p78
      %p80 = scmp.ne.s32.totalorder %s69, %s70
      %p81 = scmp.eq.s32.totalorder %s26, 0
      %p82 = por %p80, %p81
      %p83 = scmp.ne.s32.totalorder %s69, %s70
      %p84 = scmp.eq.s32.totalorder %s27, 1
      %p85 = por %p83, %p84
      %p87 = scmp.ne.s32.totalorder %s70, %s86
      %p88 = scmp.eq.s32.totalorder %s27, 0
      %p89 = por %p87, %p88
      %s90 = ssub.s32 %s28, %s40
      %s91 = ssub.s32 %s29, %s36
      %s92 = sor.u32 %s90, %s91
      %p93 = scmp.eq.s32.totalorder %s92, 0
      %s95 = sadd.s32 %s94, 1
      %s96 = scalar_select %p93, %s94, %s95
      %p99 = pneg %p93
      %p100 = scmp.eq.s32.totalorder %s21, 1
      %p101 = por %p99, %p100
      %p102 = scmp.ne.s32.totalorder %s94, %s97
      %p103 = scmp.eq.s32.totalorder %s21, 0
      %p104 = por %p102, %p103
      %p105 = scmp.ne.s32.totalorder %s94, %s97
      %p106 = scmp.eq.s32.totalorder %s26, 1
      %p107 = por %p105, %p106
      %p108 = scmp.ne.s32.totalorder %s97, %s98
      %p109 = scmp.eq.s32.totalorder %s26, 0
      %p110 = por %p108, %p109
      %p111 = scmp.ne.s32.totalorder %s97, %s98
      %p112 = scmp.eq.s32.totalorder %s27, 1
      %p113 = por %p111, %p112
      %p115 = scmp.ne.s32.totalorder %s98, %s114
      %p116 = scmp.eq.s32.totalorder %s27, 0
      %p117 = por %p115, %p116
      %s118 = ssub.s32 %s28, %s40
      %s119 = ssub.s32 %s29, %s36
      %s120 = sor.u32 %s118, %s119
      %p121 = scmp.eq.s32.totalorder %s120, 0
      %s123 = sadd.s32 %s122, 1
      %s124 = scalar_select %p121, %s122, %s123
      %p127 = pneg %p121
      %p128 = scmp.eq.s32.totalorder %s21, 1
      %p129 = por %p127, %p128
      %p130 = scmp.ne.s32.totalorder %s122, %s125
      %p131 = scmp.eq.s32.totalorder %s21, 0
      %p132 = por %p130, %p131
      %p133 = scmp.ne.s32.totalorder %s122, %s125
      %p134 = scmp.eq.s32.totalorder %s26, 1
      %p135 = por %p133, %p134
      %p136 = scmp.ne.s32.totalorder %s125, %s126
      %p137 = scmp.eq.s32.totalorder %s26, 0
      %p138 = por %p136, %p137
      %p139 = scmp.ne.s32.totalorder %s125, %s126
      %p140 = scmp.eq.s32.totalorder %s27, 1
      %p141 = por %p139, %p140
      %p143 = scmp.ne.s32.totalorder %s126, %s142
      %p144 = scmp.eq.s32.totalorder %s27, 0
      %p145 = por %p143, %p144
      %s146 = ssub.s32 %s28, %s40
      %p147 = scmp.eq.s32.totalorder %s146, 0
      %s149 = sadd.s32 %s148, 1
      %s150 = scalar_select %p147, %s148, %s149
      %p153 = pneg %p147
      %p154 = scmp.eq.s32.totalorder %s21, 1
      %p155 = por %p153, %p154
      %p156 = scmp.ne.s32.totalorder %s148, %s151
      %p157 = scmp.eq.s32.totalorder %s21, 0
      %p158 = por %p156, %p157
      %p159 = scmp.ne.s32.totalorder %s148, %s151
      %p160 = scmp.eq.s32.totalorder %s26, 1
      %p161 = por %p159, %p160
      %p162 = scmp.ne.s32.totalorder %s151, %s152
      %p163 = scmp.eq.s32.totalorder %s26, 0
      %p164 = por %p162, %p163
      %p165 = scmp.ne.s32.totalorder %s151, %s152
      %p166 = scmp.eq.s32.totalorder %s27, 1
      %p167 = por %p165, %p166
      %p169 = scmp.ne.s32.totalorder %s152, %s168
      %p170 = scmp.eq.s32.totalorder %s27, 0
      %p171 = por %p169, %p170
      %s173 = sadd.s32 %s172, 1
      %p176 = scmp.eq.s32.totalorder %s21, 1
      %p177 = scmp.ne.s32.totalorder %s172, %s174
      %p178 = scmp.eq.s32.totalorder %s21, 0
      %p179 = por %p177, %p178
      %p180 = scmp.ne.s32.totalorder %s172, %s174
      %p181 = scmp.eq.s32.totalorder %s26, 1
      %p182 = por %p180, %p181
      %p183 = scmp.ne.s32.totalorder %s174, %s175
      %p184 = scmp.eq.s32.totalorder %s26, 0
      %p185 = por %p183, %p184
      %p186 = scmp.ne.s32.totalorder %s174, %s175
      %p187 = scmp.eq.s32.totalorder %s27, 1
      %p188 = por %p186, %p187
      %p190 = scmp.ne.s32.totalorder %s175, %s189
      %p191 = scmp.eq.s32.totalorder %s27, 0
      %p192 = por %p190, %p191
      %s194 = sadd.s32 %s193, 1
      %p197 = scmp.eq.s32.totalorder %s21, 1
      %p198 = scmp.ne.s32.totalorder %s193, %s195
      %p199 = scmp.eq.s32.totalorder %s21, 0
      %p200 = por %p198, %p199
      %p201 = scmp.ne.s32.totalorder %s193, %s195
      %p202 = scmp.eq.s32.totalorder %s26, 1
      %p203 = por %p201, %p202
      %p204 = scmp.ne.s32.totalorder %s195, %s196
      %p205 = scmp.eq.s32.totalorder %s26, 0
      %p206 = por %p204, %p205
      %p207 = scmp.ne.s32.totalorder %s195, %s196
      %p208 = scmp.eq.s32.totalorder %s27, 1
      %p209 = por %p207, %p208
      %p211 = scmp.ne.s32.totalorder %s196, %s210
      %p212 = scmp.eq.s32.totalorder %s27, 0
      %p213 = por %p211, %p212
      %s215 = sadd.s32 %s214, 1
      %p218 = scmp.eq.s32.totalorder %s21, 1
      %p219 = scmp.ne.s32.totalorder %s214, %s216
      %p220 = scmp.eq.s32.totalorder %s21, 0
      %p221 = por %p219, %p220
      %p222 = scmp.ne.s32.totalorder %s214, %s216
      %p223 = scmp.eq.s32.totalorder %s26, 1
      %p224 = por %p222, %p223
      %p225 = scmp.ne.s32.totalorder %s216, %s217
      %p226 = scmp.eq.s32.totalorder %s26, 0
      %p227 = por %p225, %p226
      %p228 = scmp.ne.s32.totalorder %s216, %s217
      %p229 = scmp.eq.s32.totalorder %s27, 1
      %p230 = por %p228, %p229
      %p232 = scmp.ne.s32.totalorder %s217, %s231
      %p233 = scmp.eq.s32.totalorder %s27, 0
      %p234 = por %p232, %p233
      %s236 = sadd.s32 %s235, 1
      %p239 = scmp.eq.s32.totalorder %s21, 1
      %p240 = scmp.ne.s32.totalorder %s235, %s237
      %p241 = scmp.eq.s32.totalorder %s21, 0
      %p242 = por %p240, %p241
      %p243 = scmp.ne.s32.totalorder %s235, %s237
      %p244 = scmp.eq.s32.totalorder %s26, 1
      %p245 = por %p243, %p244
      %p246 = scmp.ne.s32.totalorder %s237, %s238
      %p247 = scmp.eq.s32.totalorder %s26, 0
      %p248 = por %p246, %p247
      %p249 = scmp.ne.s32.totalorder %s237, %s238
      %p250 = scmp.eq.s32.totalorder %s27, 1
      %p251 = por %p249, %p250
      %p253 = scmp.ne.s32.totalorder %s238, %s252
      %p254 = scmp.eq.s32.totalorder %s27, 0
      %p255 = por %p253, %p254
      %s256 = ssub.s32 %s28, %s40
      %p257 = scmp.eq.s32.totalorder %s256, 0
      %s259 = sadd.s32 %s258, 1
      %s260 = scalar_select %p257, %s258, %s259
      %p263 = pneg %p257
      %p264 = scmp.eq.s32.totalorder %s21, 1
      %p265 = por %p263, %p264
      %p266 = scmp.ne.s32.totalorder %s258, %s261
      %p267 = scmp.eq.s32.totalorder %s21, 0
      %p268 = por %p266, %p267
      %p269 = scmp.ne.s32.totalorder %s258, %s261
      %p270 = scmp.eq.s32.totalorder %s26, 1
      %p271 = por %p269, %p270
      %p272 = scmp.ne.s32.totalorder %s261, %s262
      %p273 = scmp.eq.s32.totalorder %s26, 0
      %p274 = por %p272, %p273
      %p275 = scmp.ne.s32.totalorder %s261, %s262
      %p276 = scmp.eq.s32.totalorder %s27, 1
      %p277 = por %p275, %p276
      %p279 = scmp.ne.s32.totalorder %s262, %s278
      %p280 = scmp.eq.s32.totalorder %s27, 0
      %p281 = por %p279, %p280
      %p282 = scmp.le.s32.totalorder 1, %s21
      %p283 = scmp.lt.s32.totalorder %s21, 3
      %p284 = pnand %p282, %p283
      %p285 = pneg %p284
      // Predicated region
      $region9: #{tpu_custom_call.1} parent=5 // pred_check
        _
      $region10: #{tpu_custom_call.1} parent=5 // pred_check_branch
        %287 = sbr.rel (%p284) target = $region12
      $region11: #{tpu_custom_call.1} parent=5 // pred_region
        %s288 = ssub.s32 %s21, 1
        // Predicated region
        $region13: #{tpu_custom_call.1} parent=11 // pred_check
          %p289 = pneg %p54
        $region14: #{tpu_custom_call.1} parent=11 // pred_check_branch
          %291 = sbr.rel (%p289) target = $region16
        $region15: #{tpu_custom_call.1} parent=11 // pred_region
          %s293 = ssub.s32 32, 32
          %294 = vsyncadd [#allocation6], %s293
          %s296 = sshll.u32 %s0, 4
          %s297 = int_to_ptr.vmem [resolvable:$true] %s296
          %299 = dma.vmem_to_smem %s297, 32, [#allocation4], [#allocation6]
        $region16: #{tpu_custom_call.1} parent=11 // pred_fallthru
          _
        // Predicated region
        $region17: #{tpu_custom_call.1} parent=11 // pred_check
          %p300 = pneg %p185
        $region18: #{tpu_custom_call.1} parent=11 // pred_check_branch
          %302 = sbr.rel (%p300) target = $region20
        $region19: #{tpu_custom_call.1} parent=11 // pred_region
          _
        $region20: #{tpu_custom_call.1} parent=11 // pred_fallthru
          _
        // Predicated region
        $region21: #{tpu_custom_call.1} parent=11 // pred_check
          %p303 = pneg %p206
        $region22: #{tpu_custom_call.1} parent=11 // pred_check_branch
          %305 = sbr.rel (%p303) target = $region24
        $region23: #{tpu_custom_call.1} parent=11 // pred_region
          _
        $region24: #{tpu_custom_call.1} parent=11 // pred_fallthru
          _
        // Predicated region
        $region25: #{tpu_custom_call.1} parent=11 // pred_check
          %p306 = pneg %p227
        $region26: #{tpu_custom_call.1} parent=11 // pred_check_branch
          %308 = sbr.rel (%p306) target = $region28
        $region27: #{tpu_custom_call.1} parent=11 // pred_region
          _
        $region28: #{tpu_custom_call.1} parent=11 // pred_fallthru
          _
        // Predicated region
        $region29: #{tpu_custom_call.1} parent=11 // pred_check
          %p309 = pneg %p248
        $region30: #{tpu_custom_call.1} parent=11 // pred_check_branch
          %311 = sbr.rel (%p309) target = $region32
        $region31: #{tpu_custom_call.1} parent=11 // pred_region
          _
        $region32: #{tpu_custom_call.1} parent=11 // pred_fallthru
          _
      $region12: #{tpu_custom_call.1} parent=5 // pred_fallthru
        _
      %p312 = scmp.lt.s32.totalorder %s21, 2
      // Predicated region
      $region33: #{tpu_custom_call.1} parent=5 // pred_check
        %p313 = pneg %p312
      $region34: #{tpu_custom_call.1} parent=5 // pred_check_branch
        %315 = sbr.rel (%p313) target = $region36
      $region35: #{tpu_custom_call.1} parent=5 // pred_region
        // Predicated region
        $region37: #{tpu_custom_call.1} parent=35 // pred_check
          %p316 = pneg %p76
        $region38: #{tpu_custom_call.1} parent=35 // pred_check_branch
          %318 = sbr.rel (%p316) target = $region40
        $region39: #{tpu_custom_call.1} parent=35 // pred_region
          %s319 = smul.u32 2, %s29
          %p320 = scmp.lt.s32.totalorder %s28, 1
          %s321 = scalar_select %p320, %s28, 1
          %p322 = scmp.lt.s32.totalorder %s319, 1
          %s323 = scalar_select %p322, %s319, 1
          %s324 = smul.addr %s321, 2
          %s325 = sadd.s32 %s323, %s324
          %s326 = scalar_lea.vmem %s1, %s325
          %s327 = smul.u32 2, %s29
        $region40: #{tpu_custom_call.1} parent=35 // pred_fallthru
          _
        // Predicated region
        $region41: #{tpu_custom_call.1} parent=35 // pred_check
          %p328 = pneg %p104
        $region42: #{tpu_custom_call.1} parent=35 // pred_check_branch
          %330 = sbr.rel (%p328) target = $region44
        $region43: #{tpu_custom_call.1} parent=35 // pred_region
          %s331 = smul.u32 2, %s29
          %p332 = scmp.lt.s32.totalorder %s28, 1
          %s333 = scalar_select %p332, %s28, 1
          %p334 = scmp.lt.s32.totalorder %s331, 1
          %s335 = scalar_select %p334, %s331, 1
          %s336 = smul.addr %s333, 2
          %s337 = sadd.s32 %s335, %s336
          %s338 = smul.addr %s337, 4
          %s339 = scalar_lea.vmem %s2, %s338
          %s340 = smul.u32 2, %s29
        $region44: #{tpu_custom_call.1} parent=35 // pred_fallthru
          _
        // Predicated region
        $region45: #{tpu_custom_call.1} parent=35 // pred_check
          %p341 = pneg %p132
        $region46: #{tpu_custom_call.1} parent=35 // pred_check_branch
          %343 = sbr.rel (%p341) target = $region48
        $region47: #{tpu_custom_call.1} parent=35 // pred_region
          %s344 = smul.u32 2, %s29
          %p345 = scmp.lt.s32.totalorder %s28, 1
          %s346 = scalar_select %p345, %s28, 1
          %p347 = scmp.lt.s32.totalorder %s344, 1
          %s348 = scalar_select %p347, %s344, 1
          %s349 = smul.addr %s346, 2
          %s350 = sadd.s32 %s348, %s349
          %s351 = scalar_lea.vmem %s3, %s350
          %s352 = smul.u32 2, %s29
        $region48: #{tpu_custom_call.1} parent=35 // pred_fallthru
          _
        // Predicated region
        $region49: #{tpu_custom_call.1} parent=35 // pred_check
          %p353 = pneg %p158
        $region50: #{tpu_custom_call.1} parent=35 // pred_check_branch
          %355 = sbr.rel (%p353) target = $region52
        $region51: #{tpu_custom_call.1} parent=35 // pred_region
          %p356 = scmp.lt.s32.totalorder %s28, 1
          %s357 = scalar_select %p356, %s28, 1
          %s358 = smul.addr %s357, 4
          %s359 = smul.addr %s358, 8
          %s360 = scalar_lea.vmem %s4, %s359
        $region52: #{tpu_custom_call.1} parent=35 // pred_fallthru
          _
      $region36: #{tpu_custom_call.1} parent=5 // pred_fallthru
        _
      %p361 = scmp.le.s32.totalorder 1, %s21
      %p362 = scmp.lt.s32.totalorder %s21, 3
      %p363 = pnand %p361, %p362
      %p364 = pneg %p363
      // Predicated region
      $region53: #{tpu_custom_call.1} parent=5 // pred_check
        _
      $region54: #{tpu_custom_call.1} parent=5 // pred_check_branch
        %366 = sbr.rel (%p363) target = $region56
      $region55: #{tpu_custom_call.1} parent=5 // pred_region
        %s367 = ssub.s32 %s21, 1
        // Predicated region
        $region57: #{tpu_custom_call.1} parent=55 // pred_check
          %p368 = pneg %p54
        $region58: #{tpu_custom_call.1} parent=55 // pred_check_branch
          %370 = sbr.rel (%p368) target = $region60
        $region59: #{tpu_custom_call.1} parent=55 // pred_region
          %371 = dma.done [#allocation6], 32
        $region60: #{tpu_custom_call.1} parent=55 // pred_fallthru
          _
        %372 = sfence
        %p373 = pneg %p54
        %p374 = pneg %p51
        %s375 = smul.u32 2, %s31
        %p376 = scmp.lt.s32.totalorder %s30, 1
        %s377 = scalar_select %p376, %s30, 1
        %p378 = scmp.lt.s32.totalorder %s375, 1
        %s379 = scalar_select %p378, %s375, 1
        %s380 = smul.addr %s377, 2
        %s381 = sadd.s32 %s379, %s380
        %s382 = scalar_lea.vmem %s1, %s381
        %p383 = pneg %p82
        %p384 = pneg %p79
        %s385 = smul.u32 2, %s31
        %p386 = scmp.lt.s32.totalorder %s30, 1
        %s387 = scalar_select %p386, %s30, 1
        %p388 = scmp.lt.s32.totalorder %s385, 1
        %s389 = scalar_select %p388, %s385, 1
        %s390 = smul.addr %s387, 2
        %s391 = sadd.s32 %s389, %s390
        %s392 = smul.addr %s391, 4
        %s393 = scalar_lea.vmem %s2, %s392
        %p394 = pneg %p110
        %p395 = pneg %p107
        %s396 = smul.u32 2, %s31
        %p397 = scmp.lt.s32.totalorder %s30, 1
        %s398 = scalar_select %p397, %s30, 1
        %p399 = scmp.lt.s32.totalorder %s396, 1
        %s400 = scalar_select %p399, %s396, 1
        %s401 = smul.addr %s398, 2
        %s402 = sadd.s32 %s400, %s401
        %s403 = scalar_lea.vmem %s3, %s402
        %p404 = pneg %p138
        %p405 = pneg %p135
        %p406 = scmp.lt.s32.totalorder %s30, 1
        %s407 = scalar_select %p406, %s30, 1
        %s408 = smul.addr %s407, 4
        %s409 = smul.addr %s408, 8
        %s410 = scalar_lea.vmem %s4, %s409
        %p411 = pneg %p164
        %p412 = pneg %p161
        %p413 = pneg %p185
        %p414 = pneg %p182
        %p415 = pneg %p206
        %p416 = pneg %p203
        %p417 = pneg %p227
        %p418 = pneg %p224
        %p419 = pneg %p248
        %p420 = pneg %p245
        %p421 = pneg %p274
        %p422 = pneg %p271
        %s423 = sand.u32 %s261, 1
        %s424 = scalar_lea.sflag [#allocation5], %s423
        %s425 = sand.u32 %s261, 1
        %s426 = scalar_lea.vmem [#allocation7], %s425
        %s427 = smul.u32 2, %s31
        %p428 = scmp.lt.s32.totalorder %s30, 1
        %s429 = scalar_select %p428, %s30, 1
        %p430 = scmp.lt.s32.totalorder %s427, 1
        %s431 = scalar_select %p430, %s427, 1
        %s432 = smul.addr %s429, 2
        %s433 = sadd.s32 %s431, %s432
        %s434 = scalar_lea.vmem %s1, %s433
        %s435 = smul.u32 2, %s31
        %s436 = smul.u32 2, %s31
        %p437 = scmp.lt.s32.totalorder %s30, 1
        %s438 = scalar_select %p437, %s30, 1
        %p439 = scmp.lt.s32.totalorder %s436, 1
        %s440 = scalar_select %p439, %s436, 1
        %s441 = smul.addr %s438, 2
        %s442 = sadd.s32 %s440, %s441
        %s443 = smul.addr %s442, 4
        %s444 = scalar_lea.vmem %s2, %s443
        %s445 = smul.u32 2, %s31
        %s446 = smul.u32 2, %s31
        %p447 = scmp.lt.s32.totalorder %s30, 1
        %s448 = scalar_select %p447, %s30, 1
        %p449 = scmp.lt.s32.totalorder %s446, 1
        %s450 = scalar_select %p449, %s446, 1
        %s451 = smul.addr %s448, 2
        %s452 = sadd.s32 %s450, %s451
        %s453 = scalar_lea.vmem %s3, %s452
        %s454 = smul.u32 2, %s31
        %p455 = scmp.lt.s32.totalorder %s30, 1
        %s456 = scalar_select %p455, %s30, 1
        %s457 = smul.addr %s456, 4
        %s458 = smul.addr %s457, 8
        %s459 = scalar_lea.vmem %s4, %s458
        %s461 = smul.u32 %s30, 128
        %s462 = sld [smem:[#allocation4 + %s461]]
        %s463 = sadd.s32 %s461, 1
        %s464 = sld [smem:[#allocation4 + %s463]]
        %s465 = sadd.s32 %s461, 2
        %s466 = sld [smem:[#allocation4 + %s465]]
        %p467 = scmp.eq.s32.totalorder %s31, 0
        // Predicated region
        $region61: #{tpu_custom_call.1} parent=55 // pred_check
          %p468 = pneg %p467
        $region62: #{tpu_custom_call.1} parent=55 // pred_check_branch
          %470 = sbr.rel (%p468) target = $region64
        $region63: #{tpu_custom_call.1} parent=55 // pred_region
          %s471 = scalar_lea.smem [#allocation2], 0
          %472 = sst [smem:[%s471]] 0.0
        $region64: #{tpu_custom_call.1} parent=55 // pred_fallthru
          _
        %v473 = vld [vmem:[%s434] sm:$0x3]
        %v474 = vmul.f32 %v473, 2.0
        %v475 = vsub.f32 %v474, 1.0
        %v476 = vld [vmem:[%s453] sm:$0x3]
        %v477 = vstv %s462
        %v478 = vmul.f32 %v477, %v475
        %v479 = vstv %s464
        %v480 = vmul.f32 %v479, %v476
        %v481 = vadd.f32 %v478, %v480
        %v482 = vld [vmem:[%s444] sm:$0x77]
        %v483 = vld [vmem:[%s459] sm:$0xff]
        %v484 = vld [vmem:[%s459 + $0x8] sm:$0xff]
        %v485 = vld [vmem:[%s459 + $0x10] sm:$0xff]
        %v486 = vld [vmem:[%s459 + $0x18] sm:$0xff]
        %v487 = vld [vmem:[%s5] sm:$0xff]
        %v488 = vld [vmem:[%s5 + $0x8] sm:$0xff]
        %v489 = vld [vmem:[%s5 + $0x10] sm:$0xff]
        %v490 = vld [vmem:[%s5 + $0x18] sm:$0xff]
        %492 = vset.pattern.permute.xlu0 0
        %493 = vperm.xlu0 %492, %v487
        %v494 = vpop.permute.xlu0 %493
        %497 = vset.pattern.permute.xlu0 0
        %498 = vperm.xlu0 %497, %v488
        %v499 = vpop.permute.xlu0 %498
        %502 = vset.pattern.permute.xlu0 0
        %503 = vperm.xlu0 %502, %v489
        %v504 = vpop.permute.xlu0 %503
        %507 = vset.pattern.permute.xlu0 0
        %508 = vperm.xlu0 %507, %v490
        %v509 = vpop.permute.xlu0 %508
        %v512 = vlaneseq
        %v513 = vshrl.u32 %v512, 7
        %v514 = vsub.s32 0, %v513
        %v515 = vrot.slane %v481, %v514
        %v516 = vlaneseq
        %v517 = vshrl.u32 %v516, 7
        %v518 = vsub.s32 1, %v517
        %v519 = vrot.slane %v481, %v518
        %v522 = vmul.f32 %v494, %v515
        %v523 = vmul.f32 %v494, %v519
        %v524 = vmul.f32 %v499, %v515
        %v525 = vmul.f32 %v499, %v519
        %v526 = vmul.f32 %v504, %v515
        %v527 = vmul.f32 %v504, %v519
        %v528 = vmul.f32 %v509, %v515
        %v529 = vmul.f32 %v509, %v519
        %531 = vset.pattern.permute.xlu0 0
        %532 = vperm.xlu0 %531, %v483
        %v533 = vpop.permute.xlu0 %532
        %536 = vset.pattern.permute.xlu0 0
        %537 = vperm.xlu0 %536, %v484
        %v538 = vpop.permute.xlu0 %537
        %541 = vset.pattern.permute.xlu0 0
        %542 = vperm.xlu0 %541, %v485
        %v543 = vpop.permute.xlu0 %542
        %546 = vset.pattern.permute.xlu0 0
        %547 = vperm.xlu0 %546, %v486
        %v548 = vpop.permute.xlu0 %547
        %v550 = vadd.f32 %v533, %v522
        %v551 = vadd.f32 %v533, %v523
        %v552 = vadd.f32 %v538, %v524
        %v553 = vadd.f32 %v538, %v525
        %v554 = vadd.f32 %v543, %v526
        %v555 = vadd.f32 %v543, %v527
        %v556 = vadd.f32 %v548, %v528
        %v557 = vadd.f32 %v548, %v529
        %v558 = vld [vmem:[%s6] sm:$0xff]
        %v559 = vld [vmem:[%s6 + $0x8] sm:$0xff]
        %v560 = vld [vmem:[%s6 + $0x10] sm:$0xff]
        %v561 = vld [vmem:[%s6 + $0x18] sm:$0xff]
        %563 = vset.pattern.permute.xlu0 0
        %564 = vperm.xlu0 %563, %v558
        %v565 = vpop.permute.xlu0 %564
        %568 = vset.pattern.permute.xlu0 0
        %569 = vperm.xlu0 %568, %v559
        %v570 = vpop.permute.xlu0 %569
        %573 = vset.pattern.permute.xlu0 0
        %574 = vperm.xlu0 %573, %v560
        %v575 = vpop.permute.xlu0 %574
        %578 = vset.pattern.permute.xlu0 0
        %579 = vperm.xlu0 %578, %v561
        %v580 = vpop.permute.xlu0 %579
        %v583 = vlaneseq
        %v584 = vshrl.u32 %v583, 7
        %v585 = vsub.s32 0, %v584
        %v586 = vrot.slane %v482, %v585
        %v587 = vlaneseq
        %v588 = vshrl.u32 %v587, 7
        %v589 = vsub.s32 4, %v588
        %v590 = vrot.slane %v482, %v589
        %v593 = vlaneseq
        %v594 = vshrl.u32 %v593, 7
        %v595 = vsub.s32 0, %v594
        %v596 = vrot.slane %v586, %v595
        %v597 = vlaneseq
        %v598 = vshrl.u32 %v597, 7
        %v599 = vsub.s32 0, %v598
        %v600 = vrot.slane %v590, %v599
        %v601 = vmul.f32 %v565, %v596
        %v602 = vmul.f32 %v565, %v600
        %v603 = vmul.f32 %v570, %v596
        %v604 = vmul.f32 %v570, %v600
        %v605 = vmul.f32 %v575, %v596
        %v606 = vmul.f32 %v575, %v600
        %v607 = vmul.f32 %v580, %v596
        %v608 = vmul.f32 %v580, %v600
        %v609 = vadd.f32 %v550, %v601
        %v610 = vadd.f32 %v551, %v602
        %v611 = vadd.f32 %v552, %v603
        %v612 = vadd.f32 %v553, %v604
        %v613 = vadd.f32 %v554, %v605
        %v614 = vadd.f32 %v555, %v606
        %v615 = vadd.f32 %v556, %v607
        %v616 = vadd.f32 %v557, %v608
        %617 = vset.pattern.permute.xlu0 1
        %618 = vperm.xlu0 %617, %v558
        %v619 = vpop.permute.xlu0 %618
        %621 = vset.pattern.permute.xlu0 1
        %622 = vperm.xlu0 %621, %v559
        %v623 = vpop.permute.xlu0 %622
        %625 = vset.pattern.permute.xlu0 1
        %626 = vperm.xlu0 %625, %v560
        %v627 = vpop.permute.xlu0 %626
        %629 = vset.pattern.permute.xlu0 1
        %630 = vperm.xlu0 %629, %v561
        %v631 = vpop.permute.xlu0 %630
        %v633 = vlaneseq
        %v634 = vshrl.u32 %v633, 7
        %v635 = vsub.s32 1, %v634
        %v636 = vrot.slane %v482, %v635
        %v637 = vlaneseq
        %v638 = vshrl.u32 %v637, 7
        %v639 = vsub.s32 5, %v638
        %v640 = vrot.slane %v482, %v639
        %v643 = vlaneseq
        %v644 = vshrl.u32 %v643, 7
        %v645 = vsub.s32 1, %v644
        %v646 = vrot.slane %v636, %v645
        %v647 = vlaneseq
        %v648 = vshrl.u32 %v647, 7
        %v649 = vsub.s32 1, %v648
        %v650 = vrot.slane %v640, %v649
        %v651 = vmul.f32 %v619, %v646
        %v652 = vmul.f32 %v619, %v650
        %v653 = vmul.f32 %v623, %v646
        %v654 = vmul.f32 %v623, %v650
        %v655 = vmul.f32 %v627, %v646
        %v656 = vmul.f32 %v627, %v650
        %v657 = vmul.f32 %v631, %v646
        %v658 = vmul.f32 %v631, %v650
        %v659 = vadd.f32 %v609, %v651
        %v660 = vadd.f32 %v610, %v652
        %v661 = vadd.f32 %v611, %v653
        %v662 = vadd.f32 %v612, %v654
        %v663 = vadd.f32 %v613, %v655
        %v664 = vadd.f32 %v614, %v656
        %v665 = vadd.f32 %v615, %v657
        %v666 = vadd.f32 %v616, %v658
        %667 = vset.pattern.permute.xlu0 2
        %668 = vperm.xlu0 %667, %v558
        %v669 = vpop.permute.xlu0 %668
        %671 = vset.pattern.permute.xlu0 2
        %672 = vperm.xlu0 %671, %v559
        %v673 = vpop.permute.xlu0 %672
        %675 = vset.pattern.permute.xlu0 2
        %676 = vperm.xlu0 %675, %v560
        %v677 = vpop.permute.xlu0 %676
        %679 = vset.pattern.permute.xlu0 2
        %680 = vperm.xlu0 %679, %v561
        %v681 = vpop.permute.xlu0 %680
        %v683 = vlaneseq
        %v684 = vshrl.u32 %v683, 7
        %v685 = vsub.s32 2, %v684
        %v686 = vrot.slane %v482, %v685
        %v687 = vlaneseq
        %v688 = vshrl.u32 %v687, 7
        %v689 = vsub.s32 6, %v688
        %v690 = vrot.slane %v482, %v689
        %v693 = vlaneseq
        %v694 = vshrl.u32 %v693, 7
        %v695 = vsub.s32 2, %v694
        %v696 = vrot.slane %v686, %v695
        %v697 = vlaneseq
        %v698 = vshrl.u32 %v697, 7
        %v699 = vsub.s32 2, %v698
        %v700 = vrot.slane %v690, %v699
        %v701 = vmul.f32 %v669, %v696
        %v702 = vmul.f32 %v669, %v700
        %v703 = vmul.f32 %v673, %v696
        %v704 = vmul.f32 %v673, %v700
        %v705 = vmul.f32 %v677, %v696
        %v706 = vmul.f32 %v677, %v700
        %v707 = vmul.f32 %v681, %v696
        %v708 = vmul.f32 %v681, %v700
        %v709 = vadd.f32 %v659, %v701
        %v710 = vadd.f32 %v660, %v702
        %v711 = vadd.f32 %v661, %v703
        %v712 = vadd.f32 %v662, %v704
        %v713 = vadd.f32 %v663, %v705
        %v714 = vadd.f32 %v664, %v706
        %v715 = vadd.f32 %v665, %v707
        %v716 = vadd.f32 %v666, %v708
        %v717 = vmax.f32 %v709, 0.0
        %v718 = vmax.f32 %v710, 0.0
        %v719 = vmax.f32 %v711, 0.0
        %v720 = vmax.f32 %v712, 0.0
        %v721 = vmax.f32 %v713, 0.0
        %v722 = vmax.f32 %v714, 0.0
        %v723 = vmax.f32 %v715, 0.0
        %v724 = vmax.f32 %v716, 0.0
        %v725 = vld [vmem:[%s7] sm:$0x1]
        %v726 = vpack.c.bf16 %v719, %v717
        %v727 = vpack.c.bf16 %v720, %v718
        %v728 = vpack.c.bf16 %v723, %v721
        %v729 = vpack.c.bf16 %v724, %v722
        %v730 = vld [vmem:[#allocation3] sm:$0x1]
        %732 = vset.pattern.permute.xlu0 0
        %733 = vperm.xlu0 %732, %v730
        %v734 = vpop.permute.xlu0 %733
        %v736 = vlaneseq
        %v737 = vshrl.u32 %v736, 7
        %v738 = vsub.s32 0, %v737
        %v739 = vrot.slane %v734, %v738
        %vm740 = vcmask 261120
        %v742 = vsel %vm740, %v725, 0
        %744 = vmatprep.subr.bf16.mxu0 %v727
        %745 = vmatpush1.bf16.msra.mxu0 %v726
        %746 = vmatprep.subr.bf16.mxu0 %v729
        %747 = vmatpush1.bf16.msra.mxu0 %v728
        %748 = vmatprep.subr.bf16.mxu0 0
        %749 = vmatpush1.bf16.msra.mxu0 0
        %750 = vmatprep.subr.bf16.mxu0 0
        %751 = vmatpush1.bf16.msra.mxu0 0
        %752 = vmatprep.subr.bf16.mxu0 0
        %753 = vmatpush1.bf16.msra.mxu0 0
        %754 = vmatprep.subr.bf16.mxu0 0
        %755 = vmatpush1.bf16.msra.mxu0 0
        %756 = vmatprep.subr.bf16.mxu0 0
        %757 = vmatpush1.bf16.msra.mxu0 0
        %758 = vmatprep.subr.bf16.mxu0 0
        %759 = vmatpush1.bf16.msra.mxu0 0
        %760 = vmatprep.subr.bf16.mxu0 0
        %761 = vmatpush1.bf16.msra.mxu0 0
        %762 = vmatprep.subr.bf16.mxu0 0
        %763 = vmatpush1.bf16.msra.mxu0 0
        %764 = vmatprep.subr.bf16.mxu0 0
        %765 = vmatpush1.bf16.msra.mxu0 0
        %766 = vmatprep.subr.bf16.mxu0 0
        %767 = vmatpush1.bf16.msra.mxu0 0
        %768 = vmatprep.subr.bf16.mxu0 0
        %769 = vmatpush1.bf16.msra.mxu0 0
        %770 = vmatprep.subr.bf16.mxu0 0
        %771 = vmatpush1.bf16.msra.mxu0 0
        %772 = vmatprep.subr.bf16.mxu0 0
        %773 = vmatpush1.bf16.msra.mxu0 0
        %774 = vmatprep.subr.bf16.mxu0 0
        %775 = vmatpush1.bf16.msra.mxu0 0
        %776 = vmatprep.mubr.bf16.mxu0 0
        %777 = vmatmul.mubr.bf16.gmra.mrb[0].mxu0 %v742
        %v778 = vpop.f32.mrb[0].mxu0
        %v779 = vadd.f32 %v739, %v778
        %v780 = vpop.f32.mrb[0].mxu0
        %v781 = vadd.f32 %v739, %v780
        %v782 = vpop.f32.mrb[0].mxu0
        %v783 = vpop.f32.mrb[0].mxu0
        %784 = vdwg.mxu0
        %v786 = vlaneseq
        %v787 = vshrl.u32 %v786, 7
        %v788 = vsub.s32 0, %v787
        %v789 = vrot.slane %v476, %v788
        %v790 = vlaneseq
        %v791 = vshrl.u32 %v790, 7
        %v792 = vsub.s32 1, %v791
        %v793 = vrot.slane %v476, %v792
        %v796 = vsub.f32 %v779, %v789
        %v797 = vsub.f32 %v781, %v793
        %s798 = sld [smem:[#allocation2]]
        %v799 = vmul.f32 %v796, %v796
        %v800 = vmul.f32 %v797, %v797
        %vm801 = vcmask 1040384
        %v802 = vsel %vm801, %v799, 0.0
        %v803 = vsel %vm801, %v800, 0.0
        %v804 = vadd.f32 %v802, %v803
        %805 = vadd.xlane.f32.xlu0 %v804
        %v806 = vpop.xlane.xlu0 %805
        %v807 = vrot.slane %v806, 4
        %v808 = vadd.f32 %v806, %v807
        %v809 = vrot.slane %v808, 2
        %v810 = vadd.f32 %v808, %v809
        %v811 = vrot.slane %v810, 1
        %v812 = vadd.f32 %v810, %v811
        %s813 = vtos %v812
        %s814 = sadd.f32 %s798, %s813
        %s815 = scalar_lea.smem [#allocation2], 0
        %816 = sst [smem:[%s815]] %s814
        %s817 = sld [smem:[#allocation2]]
        %s818 = smul.f32 %s817, 0.00390625
        %s819 = smul.f32 %s818, %s466
        %v820 = vstv %s819
        %821 = vst [vmem:[%s426] sm:$0x1] %v820
        %s822 = sand.u32 %s261, 1
        %s823 = scalar_lea.sflag [#allocation5], %s822
        %s824 = sand.u32 %s261, 1
        %s825 = scalar_lea.vmem [#allocation7], %s824
        // Predicated region
        $region65: #{tpu_custom_call.1} parent=55 // pred_check
          %p826 = pneg %p271
        $region66: #{tpu_custom_call.1} parent=55 // pred_check_branch
          %828 = sbr.rel (%p826) target = $region68
        $region67: #{tpu_custom_call.1} parent=55 // pred_region
          %s830 = ssub.s32 16, 16
          %831 = vsyncadd %s823, %s830
          %s832 = smul.addr %s30, 16
          %s833 = scalar_lea.hbm %s9, %s832
          %s835 = sshll.u32 %s825, 4
          %s836 = int_to_ptr.vmem [resolvable:$true] %s835
          %838 = dma.vmem_to_hbm [thread:$0]  %s836, 16, %s833, %s823
        $region68: #{tpu_custom_call.1} parent=55 // pred_fallthru
          _
      $region56: #{tpu_custom_call.1} parent=5 // pred_fallthru
        _
      %p839 = scmp.le.s32.totalorder 2, %s21
      // Predicated region
      $region69: #{tpu_custom_call.1} parent=5 // pred_check
        %p840 = pneg %p839
      $region70: #{tpu_custom_call.1} parent=5 // pred_check_branch
        %842 = sbr.rel (%p840) target = $region72
      $region71: #{tpu_custom_call.1} parent=5 // pred_region
        %s843 = ssub.s32 %s21, 2
        // Predicated region
        $region73: #{tpu_custom_call.1} parent=71 // pred_check
          %p844 = pneg %p277
        $region74: #{tpu_custom_call.1} parent=71 // pred_check_branch
          %846 = sbr.rel (%p844) target = $region76
        $region75: #{tpu_custom_call.1} parent=71 // pred_region
          %s847 = sand.u32 %s262, 1
          %s848 = scalar_lea.sflag [#allocation5], %s847
          %s849 = sand.u32 %s262, 1
          %s850 = scalar_lea.vmem [#allocation7], %s849
          %851 = dma.done %s848, 16
        $region76: #{tpu_custom_call.1} parent=71 // pred_fallthru
          _
      $region72: #{tpu_custom_call.1} parent=5 // pred_fallthru
        _
    $region6: #{tpu_custom_call.1} parent=1 // loop_footer
      %s25 = sadd.s32 1, %s21
    $region7: #{tpu_custom_call.1} parent=1 // loop_footer_branch
      %20 = sbr.rel target = $region3
    $region8: #{tpu_custom_call.1} parent=1 // loop_exit
      _
    %852 = vsyncpa [#allocation5], 1
    %s853 = scalar_lea.sflag [#allocation5], 1
    %854 = vsyncpa %s853, 1
    %855 = vsyncpa [#allocation6], 1
    %s856 = scalar_lea.sflag [#allocation6], 1
    %857 = vsyncpa %s856, 1

</llo_original>
